<compile_context>
chip_gen: v7x
topology: tpu7x:2x2x1
jax: 0.10.0
libtpu: 0.0.40
codegen_flags: <defaults>
</compile_context>

<pallas_src>
from functools import partial

import numpy as np
import jax
import jax.numpy as jnp
from jax.experimental import pallas as pl
from jax.experimental.pallas import tpu as pltpu

NUM_SOLVENT_CLASS = 9
OUT_LANES = 128  # lane-dense output slab width (lane 0 = C head, lane 1 = H head)


def _vmem():
    return pl.BlockSpec(memory_space=pltpu.MemorySpace.VMEM)


# ------------------------------ fused kernel ---------------------------------

def fused_forward_kernel(x_ref, sol_ref, gmat_ref, enc_w_ref, enc_b_ref,
                         wslab_ref, cslab_ref, out_ref, *, c_hidden1):
    m_pad = out_ref.shape[0]
    lanes = out_ref.shape[1]
    n1 = wslab_ref.shape[0] - lanes          # rows of W1_blk (== feat lane width)

    # node_encoder: relu(x @ W + b) — bf16 MXU inputs, f32 accumulation.
    x_enc = jnp.maximum(
        jnp.dot(x_ref[...], enc_w_ref[...], preferred_element_type=jnp.float32)
        + enc_b_ref[...], 0.0)                                       # [N_pad, H] f32

    # ONE merged gather/average matmul (f32: avg rows carry exact 1/k weights).
    # gmat rows 0:M are one-hot carbon selectors, rows M:2M are H-neighbor
    # averaging weights; the RHS packs [c_sol | h_sol | x_enc] side by side.
    rhs = jnp.concatenate([sol_ref[...], x_enc], axis=-1)            # [N_pad, K] f32
    g = jnp.dot(gmat_ref[...], rhs, preferred_element_type=jnp.float32)  # [2M, K]

    # Lane-stack the sel half and the avg half; the block-diagonal W1 zeroes
    # out the unused cross terms, so no lane rearrangement is needed.
    feat = jnp.concatenate([g[:m_pad], g[m_pad:]], axis=-1)          # [M, 2K] f32
    feat = feat.astype(jnp.bfloat16)

    w1 = wslab_ref[0:n1, :]        # [2K, 128]  bf16 block-diag layer-1 weights
    w2 = wslab_ref[n1:, :]         # [128, 128] bf16 block-diag layer-2 weights
    b1 = cslab_ref[0:1, :]         # [1, 128] f32 packed biases / constants
    b2 = cslab_ref[1:2, :]
    w3 = cslab_ref[2:3, :]
    b3 = cslab_ref[3:4, :]         # [b3_c, b3_h, 0, ...]

    # Both Projection heads at once: Linear -> Linear -> Dropout(eval=id) -> ReLU.
    h0 = jnp.dot(feat, w1, preferred_element_type=jnp.float32) + b1            # [M,128]
    h1 = jnp.maximum(
        jnp.dot(h0.astype(jnp.bfloat16), w2, preferred_element_type=jnp.float32)
        + b2, 0.0)                                                              # [M,128]

    # out_channels == 1: final layer is a VPU multiply + lane reduce per head
    # (not a 1/128-lane-utilization MXU matmul).
    prod = h1 * w3
    sum_c = jnp.sum(prod[:, :c_hidden1], axis=-1, keepdims=True)
    sum_h = jnp.sum(prod[:, c_hidden1:], axis=-1, keepdims=True)

    # Lane-dense unmasked store: lane 0 = carbon head, lane 1 = hydrogen head.
    pad = jnp.zeros((m_pad, lanes - 2), jnp.float32)
    out_ref[...] = jnp.concatenate([sum_c, sum_h, pad], axis=-1) + b3


# ------------------------------ jitted forward --------------------------------

@partial(jax.jit, static_argnames=("n_sel", "c_hidden1"))
def node_encode_forward(data_x, batch, solvent_class, gmat,
                        c_emb, h_emb, enc_w_bf16, enc_b, wslab, cslab,
                        *, n_sel, c_hidden1):
    n = data_x.shape[0]
    n_pad = gmat.shape[1]
    m_pad = gmat.shape[0] // 2

    # Per-node solvent embeddings, packed [c_sol | h_sol], padded to N_pad rows.
    sol = jnp.concatenate([c_emb[solvent_class][batch],
                           h_emb[solvent_class][batch]], axis=1)
    sol_pad = jnp.zeros((n_pad, sol.shape[1]), jnp.float32).at[:n].set(sol)
    x_pad = jnp.zeros((n_pad, data_x.shape[1]), jnp.bfloat16).at[:n].set(
        data_x.astype(jnp.bfloat16))

    k_rhs = sol.shape[1] + enc_w_bf16.shape[1]
    n1 = wslab.shape[0] - OUT_LANES
    flops = 2 * (n_pad * data_x.shape[1] * enc_w_bf16.shape[1]
                 + gmat.shape[0] * n_pad * k_rhs
                 + m_pad * n1 * OUT_LANES
                 + m_pad * OUT_LANES * OUT_LANES) + 2 * m_pad * OUT_LANES
    bytes_accessed = (x_pad.size * 2 + sol_pad.size * 4 + gmat.size * 4
                      + enc_w_bf16.size * 2 + enc_b.size * 4
                      + wslab.size * 2 + cslab.size * 4
                      + m_pad * OUT_LANES * 4)

    slab = pl.pallas_call(
        partial(fused_forward_kernel, c_hidden1=c_hidden1),
        out_shape=jax.ShapeDtypeStruct((m_pad, OUT_LANES), jnp.float32),
        in_specs=[_vmem()] * 7,
        out_specs=_vmem(),
        cost_estimate=pl.CostEstimate(flops=flops, transcendentals=0,
                                      bytes_accessed=bytes_accessed),
    )(x_pad, sol_pad, gmat, enc_w_bf16, enc_b, wslab, cslab)

    # Rows n_sel..m_pad-1 hold bias-propagated padding garbage; slice them off.
    return slab[:n_sel, 0:1], slab[:n_sel, 1:2]


# ------------------------------ parameter prep --------------------------------

def init_linear(key, in_dim, out_dim):
    kw, kb = jax.random.split(key)
    w = jax.random.normal(kw, (in_dim, out_dim), jnp.float32) / np.sqrt(in_dim)
    b = jax.random.normal(kb, (1, out_dim), jnp.float32) * 0.01
    return w, b


def init_projection(key, in_dim, hidden, out_dim):
    k1, k2, k3 = jax.random.split(key, 3)
    w1, b1 = init_linear(k1, in_dim, hidden[0])
    w2, b2 = init_linear(k2, hidden[0], hidden[1])
    w3, b3 = init_linear(k3, hidden[1], out_dim)
    return (w1, b1, w2, b2, w3, b3)


def pack_fused_params(enc_w, enc_b, proj_c, proj_h,
                      c_sol_dim, h_sol_dim, hidden_channels):
    """Pack both Projection heads into block-diagonal bf16 weight / f32 const slabs."""
    c_w1, c_b1, c_w2, c_b2, c_w3, c_b3 = (np.asarray(p) for p in proj_c)
    h_w1, h_b1, h_w2, h_b2, h_w3, h_b3 = (np.asarray(p) for p in proj_h)
    hc0, hc1 = c_w2.shape
    hh0, hh1 = h_w2.shape
    K = c_sol_dim + h_sol_dim + hidden_channels      # gathered-feature width (one half)
    assert hc0 + hh0 <= OUT_LANES and hc1 + hh1 <= OUT_LANES
    assert (2 * K) % 16 == 0                          # bf16 sublane-aligned slab split

    # feat lane layout: [sel@c_sol | sel@h_sol | sel@x_enc | avg@c_sol | avg@h_sol | avg@x_enc]
    w1_blk = np.zeros((2 * K, OUT_LANES), np.float32)
    w1_blk[0:c_sol_dim, 0:hc0] = c_w1[:c_sol_dim]                     # carbon, solvent part
    w1_blk[c_sol_dim + h_sol_dim:K, 0:hc0] = c_w1[c_sol_dim:]         # carbon, x_enc part
    w1_blk[K + c_sol_dim:K + c_sol_dim + h_sol_dim, hc0:hc0 + hh0] = h_w1[:h_sol_dim]
    w1_blk[K + c_sol_dim + h_sol_dim:2 * K, hc0:hc0 + hh0] = h_w1[h_sol_dim:]

    w2_blk = np.zeros((OUT_LANES, OUT_LANES), np.float32)
    w2_blk[0:hc0, 0:hc1] = c_w2
    w2_blk[hc0:hc0 + hh0, hc1:hc1 + hh1] = h_w2

    wslab = jnp.asarray(np.concatenate([w1_blk, w2_blk], axis=0),
                        dtype=jnp.bfloat16)                           # [2K+128, 128]

    cslab = np.zeros((8, OUT_LANES), np.float32)
    cslab[0, 0:hc0] = c_b1[0]
    cslab[0, hc0:hc0 + hh0] = h_b1[0]
    cslab[1, 0:hc1] = c_b2[0]
    cslab[1, hc1:hc1 + hh1] = h_b2[0]
    cslab[2, 0:hc1] = c_w3[:, 0]
    cslab[2, hc1:hc1 + hh1] = h_w3[:, 0]
    cslab[3, 0] = c_b3[0, 0]
    cslab[3, 1] = h_b3[0, 0]

    return (jnp.asarray(np.asarray(enc_w), dtype=jnp.bfloat16),
            jnp.asarray(enc_b), wslab, jnp.asarray(cslab), hc1)


def build_ch_gather(atom_type, edge_index, n_nodes):
    """Host-side resolution of the data-dependent graph loop of predict()."""
    # TODO(synk): dynamic nonzero / per-carbon neighbor loop has no static-shape
    # Pallas equivalent; it is resolved host-side into a dense select/average
    # matrix (scalar-prefetch index tables would replace this at real sizes).
    carbon_nodes = np.nonzero(atom_type == 5)[0]
    hydrogen_set = set(np.nonzero(atom_type == 0)[0].tolist())
    c_idx_connected_h, sel_rows, avg_rows = [], [], []
    for c_node in carbon_nodes:
        connected = np.nonzero(edge_index[0] == c_node)[0]
        hs = [int(edge_index[1, e]) for e in connected
              if int(edge_index[1, e]) in hydrogen_set]
        if hs:
            c_idx_connected_h.append(int(c_node))
            s = np.zeros((n_nodes,), np.float32)
            s[int(c_node)] = 1.0
            a = np.zeros((n_nodes,), np.float32)
            a[hs] = 1.0 / len(hs)
            sel_rows.append(s)
            avg_rows.append(a)
    n_sel = len(c_idx_connected_h)
    if n_sel == 0:
        raise ValueError("Batch contains no carbon bonded to hydrogen; "
                         "nothing to predict (guard per perf review).")
    n_pad = -(-n_nodes // 8) * 8
    m_pad = -(-n_sel // 8) * 8
    gmat = np.zeros((2 * m_pad, n_pad), np.float32)
    gmat[:n_sel, :n_nodes] = np.stack(sel_rows)
    gmat[m_pad:m_pad + n_sel, :n_nodes] = np.stack(avg_rows)
    return jnp.asarray(gmat), np.asarray(c_idx_connected_h), n_sel, m_pad


# ------------------------------ references ------------------------------------

def _bdot(a, b):
    return jnp.dot(a.astype(jnp.bfloat16), b.astype(jnp.bfloat16),
                   preferred_element_type=jnp.float32)


def projection_ref_f32(x, params):
    w1, b1, w2, b2, w3, b3 = params
    h1 = jnp.maximum((x @ w1 + b1) @ w2 + b2, 0.0)
    return h1 @ w3 + b3


def projection_mixed(x, params):
    # Same bf16-input / f32-accumulate recipe as the kernel.
    w1, b1, w2, b2, w3, b3 = params
    h0 = _bdot(x, w1) + b1
    h1 = jnp.maximum(_bdot(h0, w2) + b2, 0.0)
    return jnp.sum(h1 * w3[:, 0], axis=-1, keepdims=True) + b3


# ------------------------------ main -------------------------------------------

if __name__ == "__main__":
    key = jax.random.PRNGKey(0)

    # small-shape configuration consistent with the module's structure
    hidden_channels = 32
    c_solvent_emb_dim = 16
    h_solvent_emb_dim = 16
    c_out_hidden = [32, 64]
    h_out_hidden = [32, 64]
    node_feat_dim = 8

    # ---- synthetic molecular graph batch (2 molecules, 18 nodes) ----
    atom_type = np.array([5, 0, 0, 0, 5, 0, 8, 5, 0, 0,
                          5, 5, 0, 0, 7, 0, 5, 8], dtype=np.int32)
    N = atom_type.shape[0]
    batch = np.array([0] * 10 + [1] * 8, dtype=np.int32)
    bonds = [(0, 1), (0, 2), (0, 3), (0, 4), (4, 5), (4, 6), (4, 7), (7, 8), (7, 9),
             (10, 11), (11, 12), (11, 13), (10, 14), (14, 15), (10, 16), (16, 17)]
    src = [a for a, b in bonds] + [b for a, b in bonds]
    dst = [b for a, b in bonds] + [a for a, b in bonds]
    edge_index = np.array([src, dst], dtype=np.int32)
    solvent_class = np.array([2, 7], dtype=np.int32)

    key, kx = jax.random.split(key)
    data_x = np.array(jax.random.normal(kx, (N, node_feat_dim), jnp.float32))
    data_x[:, 0] = atom_type.astype(np.float32)   # z[:, 0] carries the atom type

    # ---- parameters ----
    key, k_enc, k_cemb, k_hemb, k_pc, k_ph = jax.random.split(key, 6)
    enc_w, enc_b = init_linear(k_enc, node_feat_dim, hidden_channels)
    c_emb = jax.random.normal(k_cemb, (NUM_SOLVENT_CLASS, c_solvent_emb_dim), jnp.float32)
    h_emb = jax.random.normal(k_hemb, (NUM_SOLVENT_CLASS, h_solvent_emb_dim), jnp.float32)
    proj_c = init_projection(k_pc, c_solvent_emb_dim + hidden_channels, c_out_hidden, 1)
    proj_h = init_projection(k_ph, h_solvent_emb_dim + hidden_channels, h_out_hidden, 1)

    enc_w_bf16, enc_b_j, wslab, cslab, c_hidden1 = pack_fused_params(
        enc_w, enc_b, proj_c, proj_h,
        c_solvent_emb_dim, h_solvent_emb_dim, hidden_channels)

    gmat, sel_nodes, n_sel, m_pad = build_ch_gather(atom_type, edge_index, N)

    # ---- fused forward pass (single jitted pallas_call) ----
    out_c, out_h = node_encode_forward(
        jnp.asarray(data_x), jnp.asarray(batch), jnp.asarray(solvent_class),
        gmat, c_emb, h_emb, enc_w_bf16, enc_b_j, wslab, cslab,
        n_sel=n_sel, c_hidden1=c_hidden1)
    jax.block_until_ready((out_c, out_h))

    # ---- references ----
    c_sol_pn = c_emb[solvent_class][batch]
    h_sol_pn = h_emb[solvent_class][batch]
    avg_mat = jnp.asarray(np.asarray(gmat)[m_pad:m_pad + n_sel, :N])

    # (a) bf16-MXU mirror (same numeric recipe as the kernel) — tight check.
    x_enc_m = jnp.maximum(_bdot(jnp.asarray(data_x), enc_w) + enc_b, 0.0)
    c_feat_m = jnp.concatenate([c_sol_pn[sel_nodes], x_enc_m[sel_nodes]], axis=1)
    h_feat_m = avg_mat @ jnp.concatenate([h_sol_pn, x_enc_m], axis=1)
    ref_c_m = projection_mixed(c_feat_m, proj_c)
    ref_h_m = projection_mixed(h_feat_m, proj_h)

    # (b) pure-f32 module-semantics reference — loose sanity check (bf16 drift).
    x_enc_f = jnp.maximum(jnp.asarray(data_x) @ enc_w + enc_b, 0.0)
    c_feat_f = jnp.concatenate([c_sol_pn[sel_nodes], x_enc_f[sel_nodes]], axis=1)
    h_feat_f = avg_mat @ jnp.concatenate([h_sol_pn, x_enc_f], axis=1)
    ref_c_f = projection_ref_f32(c_feat_f, proj_c)
    ref_h_f = projection_ref_f32(h_feat_f, proj_h)

    assert out_c.shape == (n_sel, 1) and out_h.shape == (n_sel, 1)
    assert np.allclose(np.asarray(out_c), np.asarray(ref_c_m), atol=3e-2, rtol=3e-2)
    assert np.allclose(np.asarray(out_h), np.asarray(ref_h_m), atol=3e-2, rtol=3e-2)
    assert np.allclose(np.asarray(out_c), np.asarray(ref_c_f), atol=2.5e-1, rtol=5e-2)
    assert np.allclose(np.asarray(out_h), np.asarray(ref_h_f), atol=2.5e-1, rtol=5e-2)

    print("KERNEL_OK")
</pallas_src>

<mosaic_0001>
module attributes {stable_mosaic.version = 11 : i64} {
  func.func @fused_forward_kernel(%arg0: memref<24x8xbf16, #tpu.memory_space<vmem>>, %arg1: memref<24x32xf32, #tpu.memory_space<vmem>>, %arg2: memref<16x24xf32, #tpu.memory_space<vmem>>, %arg3: memref<8x32xbf16, #tpu.memory_space<vmem>>, %arg4: memref<1x32xf32, #tpu.memory_space<vmem>>, %arg5: memref<256x128xbf16, #tpu.memory_space<vmem>>, %arg6: memref<8x128xf32, #tpu.memory_space<vmem>>, %arg7: memref<8x128xf32, #tpu.memory_space<vmem>>) attributes {dimension_semantics = [], scalar_prefetch = 0 : i64, scratch_operands = 0 : i64, tpu.core_type = #tpu.core_type<tc>} {
    %c0 = arith.constant 0 : index
    %c0_0 = arith.constant 0 : index
    %0 = vector.load %arg0[%c0, %c0_0] : memref<24x8xbf16, #tpu.memory_space<vmem>>, vector<24x8xbf16>
    %c0_1 = arith.constant 0 : index
    %c0_2 = arith.constant 0 : index
    %1 = vector.load %arg3[%c0_1, %c0_2] : memref<8x32xbf16, #tpu.memory_space<vmem>>, vector<8x32xbf16>
    %cst = arith.constant dense<0.000000e+00> : vector<24x32xf32>
    %2 = tpu.matmul %0, %1, %cst {dimension_numbers = #tpu.dot_dimension_numbers<[1], [0], [0], [1], [0, 0, 1, 1], [], []>} : vector<24x8xbf16>, vector<8x32xbf16>, vector<24x32xf32> -> vector<24x32xf32>
    %c0_3 = arith.constant 0 : index
    %c0_4 = arith.constant 0 : index
    %3 = vector.load %arg4[%c0_3, %c0_4] : memref<1x32xf32, #tpu.memory_space<vmem>>, vector<1x32xf32>
    %4 = vector.broadcast %3 : vector<1x32xf32> to vector<24x32xf32>
    %5 = arith.addf %2, %4 : vector<24x32xf32>
    %cst_5 = arith.constant 0.000000e+00 : f32
    %6 = vector.broadcast %cst_5 : f32 to vector<24x32xf32>
    %7 = arith.maximumf %5, %6 : vector<24x32xf32>
    %c0_6 = arith.constant 0 : index
    %c0_7 = arith.constant 0 : index
    %8 = vector.load %arg1[%c0_6, %c0_7] : memref<24x32xf32, #tpu.memory_space<vmem>>, vector<24x32xf32>
    %9 = tpu.concatenate %8, %7 in 1 : vector<24x32xf32>, vector<24x32xf32> -> vector<24x64xf32>
    %c0_8 = arith.constant 0 : index
    %c0_9 = arith.constant 0 : index
    %10 = vector.load %arg2[%c0_8, %c0_9] : memref<16x24xf32, #tpu.memory_space<vmem>>, vector<16x24xf32>
    %cst_10 = arith.constant dense<0.000000e+00> : vector<16x64xf32>
    %11 = tpu.matmul %10, %9, %cst_10 {dimension_numbers = #tpu.dot_dimension_numbers<[1], [0], [0], [1], [0, 0, 1, 1], [], []>} : vector<16x24xf32>, vector<24x64xf32>, vector<16x64xf32> -> vector<16x64xf32>
    %12 = vector.extract_strided_slice %11 {offsets = [0, 0], sizes = [8, 64], strides = [1, 1]} : vector<16x64xf32> to vector<8x64xf32>
    %13 = vector.extract_strided_slice %11 {offsets = [8, 0], sizes = [8, 64], strides = [1, 1]} : vector<16x64xf32> to vector<8x64xf32>
    %14 = tpu.concatenate %12, %13 in 1 : vector<8x64xf32>, vector<8x64xf32> -> vector<8x128xf32>
    %15 = arith.truncf %14 : vector<8x128xf32> to vector<8x128xbf16>
    %c0_11 = arith.constant 0 : index
    %c0_12 = arith.constant 0 : index
    %16 = vector.load %arg5[%c0_11, %c0_12] : memref<256x128xbf16, #tpu.memory_space<vmem>>, vector<128x128xbf16>
    %c128 = arith.constant 128 : index
    %c0_13 = arith.constant 0 : index
    %17 = vector.load %arg5[%c128, %c0_13] : memref<256x128xbf16, #tpu.memory_space<vmem>>, vector<128x128xbf16>
    %c0_14 = arith.constant 0 : index
    %c0_15 = arith.constant 0 : index
    %18 = vector.load %arg6[%c0_14, %c0_15] : memref<8x128xf32, #tpu.memory_space<vmem>>, vector<1x128xf32>
    %c1 = arith.constant 1 : index
    %c0_16 = arith.constant 0 : index
    %19 = vector.load %arg6[%c1, %c0_16] : memref<8x128xf32, #tpu.memory_space<vmem>>, vector<1x128xf32>
    %c2 = arith.constant 2 : index
    %c0_17 = arith.constant 0 : index
    %20 = vector.load %arg6[%c2, %c0_17] : memref<8x128xf32, #tpu.memory_space<vmem>>, vector<1x128xf32>
    %c3 = arith.constant 3 : index
    %c0_18 = arith.constant 0 : index
    %21 = vector.load %arg6[%c3, %c0_18] : memref<8x128xf32, #tpu.memory_space<vmem>>, vector<1x128xf32>
    %cst_19 = arith.constant dense<0.000000e+00> : vector<8x128xf32>
    %22 = tpu.matmul %15, %16, %cst_19 {dimension_numbers = #tpu.dot_dimension_numbers<[1], [0], [0], [1], [0, 0, 1, 1], [], []>} : vector<8x128xbf16>, vector<128x128xbf16>, vector<8x128xf32> -> vector<8x128xf32>
    %23 = vector.broadcast %18 : vector<1x128xf32> to vector<8x128xf32>
    %24 = arith.addf %22, %23 : vector<8x128xf32>
    %25 = arith.truncf %24 : vector<8x128xf32> to vector<8x128xbf16>
    %cst_20 = arith.constant dense<0.000000e+00> : vector<8x128xf32>
    %26 = tpu.matmul %25, %17, %cst_20 {dimension_numbers = #tpu.dot_dimension_numbers<[1], [0], [0], [1], [0, 0, 1, 1], [], []>} : vector<8x128xbf16>, vector<128x128xbf16>, vector<8x128xf32> -> vector<8x128xf32>
    %27 = vector.broadcast %19 : vector<1x128xf32> to vector<8x128xf32>
    %28 = arith.addf %26, %27 : vector<8x128xf32>
    %cst_21 = arith.constant 0.000000e+00 : f32
    %29 = vector.broadcast %cst_21 : f32 to vector<8x128xf32>
    %30 = arith.maximumf %28, %29 : vector<8x128xf32>
    %31 = vector.broadcast %20 : vector<1x128xf32> to vector<8x128xf32>
    %32 = arith.mulf %30, %31 : vector<8x128xf32>
    %33 = vector.extract_strided_slice %32 {offsets = [0, 0], sizes = [8, 64], strides = [1, 1]} : vector<8x128xf32> to vector<8x64xf32>
    %cst_22 = arith.constant dense<0.000000e+00> : vector<8xf32>
    %34 = vector.multi_reduction <add>, %33, %cst_22 [1] : vector<8x64xf32> to vector<8xf32>
    %35 = vector.shape_cast %34 : vector<8xf32> to vector<8x1xf32>
    %36 = vector.extract_strided_slice %32 {offsets = [0, 64], sizes = [8, 64], strides = [1, 1]} : vector<8x128xf32> to vector<8x64xf32>
    %cst_23 = arith.constant dense<0.000000e+00> : vector<8xf32>
    %37 = vector.multi_reduction <add>, %36, %cst_23 [1] : vector<8x64xf32> to vector<8xf32>
    %38 = vector.shape_cast %37 : vector<8xf32> to vector<8x1xf32>
    %cst_24 = arith.constant 0.000000e+00 : f32
    %39 = vector.broadcast %cst_24 : f32 to vector<8x126xf32>
    %40 = tpu.concatenate %35, %38, %39 in 1 : vector<8x1xf32>, vector<8x1xf32>, vector<8x126xf32> -> vector<8x128xf32>
    %41 = vector.broadcast %21 : vector<1x128xf32> to vector<8x128xf32>
    %42 = arith.addf %40, %41 : vector<8x128xf32>
    %c0_25 = arith.constant 0 : index
    %c0_26 = arith.constant 0 : index
    %43 = vector.load %arg7[%c0_25, %c0_26] : memref<8x128xf32, #tpu.memory_space<vmem>>, vector<8x128xf32>
    tpu.vector_store %arg7[%c0_25, %c0_26], %42 {strides = array<i32>} : memref<8x128xf32, #tpu.memory_space<vmem>>, vector<8x128xf32>,
    return
  }
}

</mosaic_0001>

<llo_original>
// kernel: node_encode_forward.1
$region0: #{node_encode_forward.1}
  #allocation0 [shape = 'u32[]', space=smem, size = 0x4, offset = 0x4, fixed_abs, tag = 'smem constant byte address 0x4 - core index']
  #allocation1 [shape = 'u32[144,128]{1,0:T(1,128)}', space=vmem, size = 0x12000, scoped, tag = 'internal scratch']
  %s0 = inlined_call_operand.vmem [shape: bf16[24,8], index: 0, kind: input, shape index: {}]
  %s1 = inlined_call_operand.vmem [shape: f32[24,32], index: 1, kind: input, shape index: {}]
  %s2 = inlined_call_operand.vmem [shape: f32[16,24], index: 2, kind: input, shape index: {}]
  %s3 = inlined_call_operand.vmem [shape: bf16[8,32], index: 3, kind: input, shape index: {}]
  %s4 = inlined_call_operand.vmem [shape: f32[1,32], index: 4, kind: input, shape index: {}]
  %s5 = inlined_call_operand.vmem [shape: bf16[256,128], index: 5, kind: input, shape index: {}]
  %s6 = inlined_call_operand.vmem [shape: f32[8,128], index: 6, kind: input, shape index: {}]
  %s7 = inlined_call_operand.vmem [shape: f32[8,128], index: 7, kind: output, shape index: {}]
  %s8 = sld [smem:[#allocation0]]
  $region38: #{node_encode_forward.1} parent=0
    _
  %s10 = ssub.s32 1, %s8
  %s11 = scalar_select 0, %s10, %s8
  // Predicated region
  $region2: #{node_encode_forward.1} parent=0 // pred_check
    _
  $region3: #{node_encode_forward.1} parent=0 // pred_check_branch
    %13 = sbr.rel (0) target = $region5
  $region4: #{node_encode_forward.1} parent=0 // pred_region
    _
  $region5: #{node_encode_forward.1} parent=0 // pred_fallthru
    _
  // Predicated region
  $region6: #{node_encode_forward.1} parent=0 // pred_check
    _
  $region7: #{node_encode_forward.1} parent=0 // pred_check_branch
    %15 = sbr.rel (0) target = $region9
  $region8: #{node_encode_forward.1} parent=0 // pred_region
    _
  $region9: #{node_encode_forward.1} parent=0 // pred_fallthru
    _
  // Predicated region
  $region10: #{node_encode_forward.1} parent=0 // pred_check
    _
  $region11: #{node_encode_forward.1} parent=0 // pred_check_branch
    %17 = sbr.rel (0) target = $region13
  $region12: #{node_encode_forward.1} parent=0 // pred_region
    _
  $region13: #{node_encode_forward.1} parent=0 // pred_fallthru
    _
  // Predicated region
  $region14: #{node_encode_forward.1} parent=0 // pred_check
    _
  $region15: #{node_encode_forward.1} parent=0 // pred_check_branch
    %19 = sbr.rel (0) target = $region17
  $region16: #{node_encode_forward.1} parent=0 // pred_region
    _
  $region17: #{node_encode_forward.1} parent=0 // pred_fallthru
    _
  // Predicated region
  $region18: #{node_encode_forward.1} parent=0 // pred_check
    _
  $region19: #{node_encode_forward.1} parent=0 // pred_check_branch
    %21 = sbr.rel (0) target = $region21
  $region20: #{node_encode_forward.1} parent=0 // pred_region
    _
  $region21: #{node_encode_forward.1} parent=0 // pred_fallthru
    _
  // Predicated region
  $region22: #{node_encode_forward.1} parent=0 // pred_check
    _
  $region23: #{node_encode_forward.1} parent=0 // pred_check_branch
    %23 = sbr.rel (0) target = $region25
  $region24: #{node_encode_forward.1} parent=0 // pred_region
    _
  $region25: #{node_encode_forward.1} parent=0 // pred_fallthru
    _
  // Predicated region
  $region26: #{node_encode_forward.1} parent=0 // pred_check
    _
  $region27: #{node_encode_forward.1} parent=0 // pred_check_branch
    %25 = sbr.rel (0) target = $region29
  $region28: #{node_encode_forward.1} parent=0 // pred_region
    _
  $region29: #{node_encode_forward.1} parent=0 // pred_fallthru
    _
  %v27 = vld [vmem:[%s0] sm:$0xf]
  %v28 = vld [vmem:[%s0 + $0x4] sm:$0xf]
  %v29 = vld [vmem:[%s0 + $0x8] sm:$0xf]
  %v30 = vld [vmem:[%s3] sm:$0xf]
  %v31 = vld [vmem:[%s4] sm:$0x1]
  %v33 = vlaneseq
  %v34 = vshrl.u32 %v33, 7
  %v35 = vsub.s32 0, %v34
  %v36 = vrot.slane %v31, %v35
  %v41 = vunpack.c.l.b16 %v27
  %v42 = vunpack.c.l.b16 %v28
  %v43 = vunpack.c.l.b16 %v29
  %v44 = vpack.c.b16 %v42, %v41
  %v45 = vpack.c.b16 %v43, %v43
  %vm46 = vcmask 64512
  %v48 = vsel %vm46, %v44, 0
  %v51 = vsel %vm46, %v45, 0
  %vm53 = vcmask 1043456
  %v55 = vsel %vm53, %v30, 0
  %57 = vmatprep.subr.bf16.mxu0 0
  %58 = vmatpush1.bf16.msra.mxu0 %v55
  %59 = vmatprep.subr.bf16.mxu0 0
  %60 = vmatpush1.bf16.msra.mxu0 0
  %61 = vmatprep.subr.bf16.mxu0 0
  %62 = vmatpush1.bf16.msra.mxu0 0
  %63 = vmatprep.subr.bf16.mxu0 0
  %64 = vmatpush1.bf16.msra.mxu0 0
  %65 = vmatprep.subr.bf16.mxu0 0
  %66 = vmatpush1.bf16.msra.mxu0 0
  %67 = vmatprep.subr.bf16.mxu0 0
  %68 = vmatpush1.bf16.msra.mxu0 0
  %69 = vmatprep.subr.bf16.mxu0 0
  %70 = vmatpush1.bf16.msra.mxu0 0
  %71 = vmatprep.subr.bf16.mxu0 0
  %72 = vmatpush1.bf16.msra.mxu0 0
  %73 = vmatprep.subr.bf16.mxu0 0
  %74 = vmatpush1.bf16.msra.mxu0 0
  %75 = vmatprep.subr.bf16.mxu0 0
  %76 = vmatpush1.bf16.msra.mxu0 0
  %77 = vmatprep.subr.bf16.mxu0 0
  %78 = vmatpush1.bf16.msra.mxu0 0
  %79 = vmatprep.subr.bf16.mxu0 0
  %80 = vmatpush1.bf16.msra.mxu0 0
  %81 = vmatprep.subr.bf16.mxu0 0
  %82 = vmatpush1.bf16.msra.mxu0 0
  %83 = vmatprep.subr.bf16.mxu0 0
  %84 = vmatpush1.bf16.msra.mxu0 0
  %85 = vmatprep.subr.bf16.mxu0 0
  %86 = vmatpush1.bf16.msra.mxu0 0
  %87 = vmatprep.subr.bf16.mxu0 0
  %88 = vmatpush1.bf16.msra.mxu0 0
  %89 = vmatprep.mubr.bf16.mxu0 0
  %90 = vmatmul.mubr.bf16.gmra.mrb[0].mxu0 %v48
  %v91 = vpop.f32.mrb[0].mxu0
  %v92 = vadd.f32 %v36, %v91
  %v93 = vpop.f32.mrb[0].mxu0
  %v94 = vpop.f32.mrb[0].mxu0
  %v95 = vadd.f32 %v36, %v94
  %v96 = vpop.f32.mrb[0].mxu0
  %97 = vmatprep.mubr.bf16.mxu0 0
  %98 = vmatmul.mubr.bf16.gmra.mrb[0].mxu0 %v51
  %v99 = vpop.f32.mrb[0].mxu0
  %v100 = vadd.f32 %v36, %v99
  %v101 = vpop.f32.mrb[0].mxu0
  %v102 = vpop.f32.mrb[0].mxu0
  %v103 = vpop.f32.mrb[0].mxu0
  %104 = vdwg.mxu0
  %v105 = vmax.f32 %v92, 0.0
  %v106 = vmax.f32 %v95, 0.0
  %v107 = vmax.f32 %v100, 0.0
  %v108 = vld [vmem:[%s1] sm:$0xff]
  %v109 = vld [vmem:[%s1 + $0x8] sm:$0xff]
  %v110 = vld [vmem:[%s1 + $0x10] sm:$0xff]
  %114 = vrot.lane.b32.xlu0 %v105, 32
  %v115 = vpop.permute.xlu0 %114
  %116 = vrot.lane.b32.xlu0 %v106, 32
  %v117 = vpop.permute.xlu0 %116
  %118 = vrot.lane.b32.xlu0 %v107, 32
  %v119 = vpop.permute.xlu0 %118
  %vm123 = vcmask 261120
  %v124 = vsel %vm123, %v108, %v115
  %v125 = vsel %vm123, %v109, %v117
  %v126 = vsel %vm123, %v110, %v119
  %v127 = vld [vmem:[%s2] sm:$0xff]
  %v128 = vld [vmem:[%s2 + $0x8] sm:$0xff]
  %vm129 = vcmask 195584
  %v131 = vsel %vm129, %v127, 0
  %v134 = vsel %vm129, %v128, 0
  %136 = vmatprep.subr.mxu0 0.0
  %137 = vmatpush1.msra.mxu0 %v124
  %138 = vmatprep.subr.mxu0 0.0
  %139 = vmatpush1.msra.mxu0 %v125
  %140 = vmatprep.subr.mxu0 0.0
  %141 = vmatpush1.msra.mxu0 %v126
  %142 = vmatprep.subr.mxu0 0.0
  %143 = vmatpush1.msra.mxu0 0.0
  %144 = vmatprep.subr.mxu0 0.0
  %145 = vmatpush1.msra.mxu0 0.0
  %146 = vmatprep.subr.mxu0 0.0
  %147 = vmatpush1.msra.mxu0 0.0
  %148 = vmatprep.subr.mxu0 0.0
  %149 = vmatpush1.msra.mxu0 0.0
  %150 = vmatprep.subr.mxu0 0.0
  %151 = vmatpush1.msra.mxu0 0.0
  %152 = vmatprep.subr.mxu0 0.0
  %153 = vmatpush1.msra.mxu0 0.0
  %154 = vmatprep.subr.mxu0 0.0
  %155 = vmatpush1.msra.mxu0 0.0
  %156 = vmatprep.subr.mxu0 0.0
  %157 = vmatpush1.msra.mxu0 0.0
  %158 = vmatprep.subr.mxu0 0.0
  %159 = vmatpush1.msra.mxu0 0.0
  %160 = vmatprep.subr.mxu0 0.0
  %161 = vmatpush1.msra.mxu0 0.0
  %162 = vmatprep.subr.mxu0 0.0
  %163 = vmatpush1.msra.mxu0 0.0
  %164 = vmatprep.subr.mxu0 0.0
  %165 = vmatpush1.msra.mxu0 0.0
  %166 = vmatprep.subr.mxu0 0.0
  %167 = vmatpush1.msra.mxu0 0.0
  %168 = vmatprep.subr.mxu0 0.0
  %169 = vmatpush1.msra.mxu0 0.0
  %170 = vmatprep.subr.mxu0 0.0
  %171 = vmatpush1.msra.mxu0 0.0
  %172 = vmatprep.subr.mxu0 0.0
  %173 = vmatpush1.msra.mxu0 0.0
  %174 = vmatprep.subr.mxu0 0.0
  %175 = vmatpush1.msra.mxu0 0.0
  %176 = vmatprep.subr.mxu0 0.0
  %177 = vmatpush1.msra.mxu0 0.0
  %178 = vmatprep.subr.mxu0 0.0
  %179 = vmatpush1.msra.mxu0 0.0
  %180 = vmatprep.subr.mxu0 0.0
  %181 = vmatpush1.msra.mxu0 0.0
  %182 = vmatprep.subr.mxu0 0.0
  %183 = vmatpush1.msra.mxu0 0.0
  %184 = vmatprep.subr.mxu0 0.0
  %185 = vmatpush1.msra.mxu0 0.0
  %186 = vmatprep.subr.mxu0 0.0
  %187 = vmatpush1.msra.mxu0 0.0
  %188 = vmatprep.subr.mxu0 0.0
  %189 = vmatpush1.msra.mxu0 0.0
  %190 = vmatprep.subr.mxu0 0.0
  %191 = vmatpush1.msra.mxu0 0.0
  %192 = vmatprep.subr.mxu0 0.0
  %193 = vmatpush1.msra.mxu0 0.0
  %194 = vmatprep.subr.mxu0 0.0
  %195 = vmatpush1.msra.mxu0 0.0
  %196 = vmatprep.subr.mxu0 0.0
  %197 = vmatpush1.msra.mxu0 0.0
  %198 = vmatprep.subr.mxu0 0.0
  %199 = vmatpush1.msra.mxu0 0.0
  %200 = vmatprep.mubr.f32.mxu0 0.0
  %201 = vmatmul.mubr.f32.gmra.mrb[0].mxu0 %v131
  %v202 = vpop.f32.mrb[0].mxu0
  %v203 = vadd.f32 0.0, %v202
  %v204 = vpop.f32.mrb[0].mxu0
  %205 = vmatprep.mubr.f32.mxu0 0.0
  %206 = vmatmul.mubr.f32.gmra.mrb[0].mxu0 %v134
  %v207 = vpop.f32.mrb[0].mxu0
  %v208 = vadd.f32 0.0, %v207
  %v209 = vpop.f32.mrb[0].mxu0
  %210 = vdwg.mxu0
  %212 = vrot.lane.b32.xlu0 %v208, 64
  %v213 = vpop.permute.xlu0 %212
  %vm215 = vcmask 523264
  %v216 = vsel %vm215, %v203, %v213
  %v217 = vpack.c.bf16 %v216, %v216
  %v218 = vld [vmem:[%s5] sm:$0xf]
  %v219 = vld [vmem:[%s5 + $0x4] sm:$0xf]
  %v220 = vld [vmem:[%s5 + $0x8] sm:$0xf]
  %v221 = vld [vmem:[%s5 + $0xc] sm:$0xf]
  %v222 = vld [vmem:[%s5 + $0x10] sm:$0xf]
  %v223 = vld [vmem:[%s5 + $0x14] sm:$0xf]
  %v224 = vld [vmem:[%s5 + $0x18] sm:$0xf]
  %v225 = vld [vmem:[%s5 + $0x1c] sm:$0xf]
  %v226 = vld [vmem:[%s5 + $0x20] sm:$0xf]
  %v227 = vld [vmem:[%s5 + $0x24] sm:$0xf]
  %v228 = vld [vmem:[%s5 + $0x28] sm:$0xf]
  %v229 = vld [vmem:[%s5 + $0x2c] sm:$0xf]
  %v230 = vld [vmem:[%s5 + $0x30] sm:$0xf]
  %v231 = vld [vmem:[%s5 + $0x34] sm:$0xf]
  %v232 = vld [vmem:[%s5 + $0x38] sm:$0xf]
  %v233 = vld [vmem:[%s5 + $0x3c] sm:$0xf]
  %v234 = vld [vmem:[%s5 + $0x40] sm:$0xf]
  %v235 = vld [vmem:[%s5 + $0x44] sm:$0xf]
  %v236 = vld [vmem:[%s5 + $0x48] sm:$0xf]
  %v237 = vld [vmem:[%s5 + $0x4c] sm:$0xf]
  %v238 = vld [vmem:[%s5 + $0x50] sm:$0xf]
  %v239 = vld [vmem:[%s5 + $0x54] sm:$0xf]
  %v240 = vld [vmem:[%s5 + $0x58] sm:$0xf]
  %v241 = vld [vmem:[%s5 + $0x5c] sm:$0xf]
  %v242 = vld [vmem:[%s5 + $0x60] sm:$0xf]
  %v243 = vld [vmem:[%s5 + $0x64] sm:$0xf]
  %v244 = vld [vmem:[%s5 + $0x68] sm:$0xf]
  %v245 = vld [vmem:[%s5 + $0x6c] sm:$0xf]
  %v246 = vld [vmem:[%s5 + $0x70] sm:$0xf]
  %v247 = vld [vmem:[%s5 + $0x74] sm:$0xf]
  %v248 = vld [vmem:[%s5 + $0x78] sm:$0xf]
  %v249 = vld [vmem:[%s5 + $0x7c] sm:$0xf]
  %v250 = vld [vmem:[%s6] sm:$0x1]
  %v251 = vld [vmem:[%s6 + $0x1] sm:$0x1]
  %v252 = vld [vmem:[%s6 + $0x2] sm:$0x1]
  %v253 = vld [vmem:[%s6 + $0x3] sm:$0x1]
  %v254 = vlaneseq
  %v255 = vshrl.u32 %v254, 7
  %v256 = vsub.s32 0, %v255
  %v257 = vrot.slane %v250, %v256
  %v274 = vunpack.c.l.b16 %v218
  %v275 = vunpack.c.l.b16 %v219
  %v276 = vunpack.c.l.b16 %v220
  %v277 = vunpack.c.l.b16 %v221
  %v278 = vunpack.c.l.b16 %v222
  %v279 = vunpack.c.l.b16 %v223
  %v280 = vunpack.c.l.b16 %v224
  %v281 = vunpack.c.l.b16 %v225
  %v282 = vunpack.c.l.b16 %v226
  %v283 = vunpack.c.l.b16 %v227
  %v284 = vunpack.c.l.b16 %v228
  %v285 = vunpack.c.l.b16 %v229
  %v286 = vunpack.c.l.b16 %v230
  %v287 = vunpack.c.l.b16 %v231
  %v288 = vunpack.c.l.b16 %v232
  %v289 = vunpack.c.l.b16 %v233
  %v290 = vpack.c.b16 %v275, %v274
  %v291 = vpack.c.b16 %v277, %v276
  %v292 = vpack.c.b16 %v279, %v278
  %v293 = vpack.c.b16 %v281, %v280
  %v294 = vpack.c.b16 %v283, %v282
  %v295 = vpack.c.b16 %v285, %v284
  %v296 = vpack.c.b16 %v287, %v286
  %v297 = vpack.c.b16 %v289, %v288
  %306 = vmatprep.subr.bf16.mxu0 0
  %307 = vmatpush1.bf16.msra.mxu0 %v290
  %308 = vmatprep.subr.bf16.mxu0 0
  %309 = vmatpush1.bf16.msra.mxu0 %v291
  %310 = vmatprep.subr.bf16.mxu0 0
  %311 = vmatpush1.bf16.msra.mxu0 %v292
  %312 = vmatprep.subr.bf16.mxu0 0
  %313 = vmatpush1.bf16.msra.mxu0 %v293
  %314 = vmatprep.subr.bf16.mxu0 0
  %315 = vmatpush1.bf16.msra.mxu0 %v294
  %316 = vmatprep.subr.bf16.mxu0 0
  %317 = vmatpush1.bf16.msra.mxu0 %v295
  %318 = vmatprep.subr.bf16.mxu0 0
  %319 = vmatpush1.bf16.msra.mxu0 %v296
  %320 = vmatprep.subr.bf16.mxu0 0
  %321 = vmatpush1.bf16.msra.mxu0 %v297
  %322 = vmatprep.subr.bf16.mxu0 0
  %323 = vmatpush1.bf16.msra.mxu0 0
  %324 = vmatprep.subr.bf16.mxu0 0
  %325 = vmatpush1.bf16.msra.mxu0 0
  %326 = vmatprep.subr.bf16.mxu0 0
  %327 = vmatpush1.bf16.msra.mxu0 0
  %328 = vmatprep.subr.bf16.mxu0 0
  %329 = vmatpush1.bf16.msra.mxu0 0
  %330 = vmatprep.subr.bf16.mxu0 0
  %331 = vmatpush1.bf16.msra.mxu0 0
  %332 = vmatprep.subr.bf16.mxu0 0
  %333 = vmatpush1.bf16.msra.mxu0 0
  %334 = vmatprep.subr.bf16.mxu0 0
  %335 = vmatpush1.bf16.msra.mxu0 0
  %336 = vmatprep.subr.bf16.mxu0 0
  %337 = vmatpush1.bf16.msra.mxu0 0
  %338 = vmatprep.mubr.bf16.mxu0 0
  %339 = vmatmul.mubr.bf16.gmra.mrb[0].mxu0 %v217
  %v340 = vpop.f32.mrb[0].mxu0
  %v341 = vadd.f32 %v257, %v340
  %v342 = vpop.f32.mrb[0].mxu0
  %v343 = vpop.f32.mrb[0].mxu0
  %v344 = vpop.f32.mrb[0].mxu0
  %345 = vdwg.mxu0
  %v346 = vpack.c.bf16 %v341, %v341
  %v347 = vlaneseq
  %v348 = vshrl.u32 %v347, 7
  %v349 = vsub.s32 0, %v348
  %v350 = vrot.slane %v251, %v349
  %v367 = vunpack.c.l.b16 %v234
  %v368 = vunpack.c.l.b16 %v235
  %v369 = vunpack.c.l.b16 %v236
  %v370 = vunpack.c.l.b16 %v237
  %v371 = vunpack.c.l.b16 %v238
  %v372 = vunpack.c.l.b16 %v239
  %v373 = vunpack.c.l.b16 %v240
  %v374 = vunpack.c.l.b16 %v241
  %v375 = vunpack.c.l.b16 %v242
  %v376 = vunpack.c.l.b16 %v243
  %v377 = vunpack.c.l.b16 %v244
  %v378 = vunpack.c.l.b16 %v245
  %v379 = vunpack.c.l.b16 %v246
  %v380 = vunpack.c.l.b16 %v247
  %v381 = vunpack.c.l.b16 %v248
  %v382 = vunpack.c.l.b16 %v249
  %v383 = vpack.c.b16 %v368, %v367
  %v384 = vpack.c.b16 %v370, %v369
  %v385 = vpack.c.b16 %v372, %v371
  %v386 = vpack.c.b16 %v374, %v373
  %v387 = vpack.c.b16 %v376, %v375
  %v388 = vpack.c.b16 %v378, %v377
  %v389 = vpack.c.b16 %v380, %v379
  %v390 = vpack.c.b16 %v382, %v381
  %399 = vmatprep.subr.bf16.mxu0 0
  %400 = vmatpush1.bf16.msra.mxu0 %v383
  %401 = vmatprep.subr.bf16.mxu0 0
  %402 = vmatpush1.bf16.msra.mxu0 %v384
  %403 = vmatprep.subr.bf16.mxu0 0
  %404 = vmatpush1.bf16.msra.mxu0 %v385
  %405 = vmatprep.subr.bf16.mxu0 0
  %406 = vmatpush1.bf16.msra.mxu0 %v386
  %407 = vmatprep.subr.bf16.mxu0 0
  %408 = vmatpush1.bf16.msra.mxu0 %v387
  %409 = vmatprep.subr.bf16.mxu0 0
  %410 = vmatpush1.bf16.msra.mxu0 %v388
  %411 = vmatprep.subr.bf16.mxu0 0
  %412 = vmatpush1.bf16.msra.mxu0 %v389
  %413 = vmatprep.subr.bf16.mxu0 0
  %414 = vmatpush1.bf16.msra.mxu0 %v390
  %415 = vmatprep.subr.bf16.mxu0 0
  %416 = vmatpush1.bf16.msra.mxu0 0
  %417 = vmatprep.subr.bf16.mxu0 0
  %418 = vmatpush1.bf16.msra.mxu0 0
  %419 = vmatprep.subr.bf16.mxu0 0
  %420 = vmatpush1.bf16.msra.mxu0 0
  %421 = vmatprep.subr.bf16.mxu0 0
  %422 = vmatpush1.bf16.msra.mxu0 0
  %423 = vmatprep.subr.bf16.mxu0 0
  %424 = vmatpush1.bf16.msra.mxu0 0
  %425 = vmatprep.subr.bf16.mxu0 0
  %426 = vmatpush1.bf16.msra.mxu0 0
  %427 = vmatprep.subr.bf16.mxu0 0
  %428 = vmatpush1.bf16.msra.mxu0 0
  %429 = vmatprep.subr.bf16.mxu0 0
  %430 = vmatpush1.bf16.msra.mxu0 0
  %431 = vmatprep.mubr.bf16.mxu0 0
  %432 = vmatmul.mubr.bf16.gmra.mrb[0].mxu0 %v346
  %v433 = vpop.f32.mrb[0].mxu0
  %v434 = vadd.f32 %v350, %v433
  %v435 = vpop.f32.mrb[0].mxu0
  %v436 = vpop.f32.mrb[0].mxu0
  %v437 = vpop.f32.mrb[0].mxu0
  %438 = vdwg.mxu0
  %v439 = vmax.f32 %v434, 0.0
  %v440 = vlaneseq
  %v441 = vshrl.u32 %v440, 7
  %v442 = vsub.s32 0, %v441
  %v443 = vrot.slane %v252, %v442
  %v444 = vmul.f32 %v439, %v443
  %v445 = vsel %vm215, %v444, 0.0
  %446 = vadd.xlane.f32.xlu0 %v445
  %v447 = vpop.xlane.xlu0 %446
  %449 = vrot.lane.b32.xlu0 %v444, 64
  %v450 = vpop.permute.xlu0 %449
  %v452 = vsel %vm215, %v450, 0.0
  %453 = vadd.xlane.f32.xlu0 %v452
  %v454 = vpop.xlane.xlu0 %453
  %vm455 = vcmask 7168
  %v456 = vsel %vm455, %v447, %v454
  %vm457 = vcmask 15360
  %v458 = vsel %vm457, %v456, 0.0
  %v459 = vlaneseq
  %v460 = vshrl.u32 %v459, 7
  %v461 = vsub.s32 0, %v460
  %v462 = vrot.slane %v253, %v461
  %v463 = vadd.f32 %v458, %v462
  %464 = vst [vmem:[%s7] sm:$0xff] %v463
  // Predicated region
  $region30: #{node_encode_forward.1} parent=0 // pred_check
    _
  $region31: #{node_encode_forward.1} parent=0 // pred_check_branch
    %466 = sbr.rel (0) target = $region33
  $region32: #{node_encode_forward.1} parent=0 // pred_region
    _
  $region33: #{node_encode_forward.1} parent=0 // pred_fallthru
    _
  // Predicated region
  $region34: #{node_encode_forward.1} parent=0 // pred_check
    _
  $region35: #{node_encode_forward.1} parent=0 // pred_check_branch
    %468 = sbr.rel (0) target = $region37
  $region36: #{node_encode_forward.1} parent=0 // pred_region
    _
  $region37: #{node_encode_forward.1} parent=0 // pred_fallthru
    _

</llo_original>
